<compile_context>
chip_gen: v5e
topology: v5e:2x2
jax: 0.10.0
libtpu: 0.0.40
codegen_flags: <defaults>
</compile_context>

<pallas_src>
import math

import jax
import jax.numpy as jnp
from jax.experimental import pallas as pl
from jax.experimental.pallas import tpu as pltpu


def _mlp_res_kernel(x_ref, w1_ref, b1_ref, w2_ref, b2_ref, ws_ref, bs_ref, o_ref):
    # x_ref block: (1, C_in, TL) -> (C_in, TL); channels on sublanes, points on lanes.
    x = x_ref[0].astype(jnp.float32)

    # conv_1 + ReLU:  (hidden, C_in) @ (C_in, TL) + (hidden, 1)
    h = jnp.dot(w1_ref[...], x, preferred_element_type=jnp.float32) + b1_ref[...]
    h = jnp.maximum(h, 0.0)

    # conv_2:  (C_out, hidden) @ (hidden, TL) + (C_out, 1)
    out = jnp.dot(w2_ref[...], h, preferred_element_type=jnp.float32) + b2_ref[...]

    # conv_shortcut:  (C_out, C_in) @ (C_in, TL) + (C_out, 1)
    sc = jnp.dot(ws_ref[...], x, preferred_element_type=jnp.float32) + bs_ref[...]

    o_ref[0] = (out + sc).astype(o_ref.dtype)


def mlp_res_forward(x, w1, b1, w2, b2, ws, bs, *, tn=512):
    """MLP_Res forward.

    x:  (B, C_in, N)    NCW, like PyTorch Conv1d input.
    w1: (hidden, C_in)  conv_1 weight (PyTorch (out,in,1) with kernel dim squeezed)
    b1: (hidden,)
    w2: (C_out, hidden) conv_2 weight
    b2: (C_out,)
    ws: (C_out, C_in)   conv_shortcut weight
    bs: (C_out,)
    Returns (B, C_out, N).
    """
    B, C_in, N = x.shape
    hidden = w1.shape[0]
    C_out = w2.shape[0]
    assert tn % 128 == 0, "point tile must be a multiple of 128 lanes"

    # Lane tile: at least 128 (lane-dense stores), at most `tn`.
    tn_eff = min(tn, pl.cdiv(N, 128) * 128)
    Np = pl.cdiv(N, tn_eff) * tn_eff
    if Np != N:
        x = jnp.pad(x, ((0, 0), (0, 0), (0, Np - N)))  # padded points sliced off below
    n_tiles = Np // tn_eff

    # Biases as (C, 1) columns so they broadcast across the lane (point) axis.
    b1c = b1.reshape(hidden, 1)
    b2c = b2.reshape(C_out, 1)
    bsc = bs.reshape(C_out, 1)

    in_specs = [
        pl.BlockSpec((1, C_in, tn_eff), lambda b, j: (b, 0, j)),   # x tile
        pl.BlockSpec((hidden, C_in), lambda b, j: (0, 0)),         # w1
        pl.BlockSpec((hidden, 1), lambda b, j: (0, 0)),            # b1
        pl.BlockSpec((C_out, hidden), lambda b, j: (0, 0)),        # w2
        pl.BlockSpec((C_out, 1), lambda b, j: (0, 0)),             # b2
        pl.BlockSpec((C_out, C_in), lambda b, j: (0, 0)),          # ws
        pl.BlockSpec((C_out, 1), lambda b, j: (0, 0)),             # bs
    ]
    out_specs = pl.BlockSpec((1, C_out, tn_eff), lambda b, j: (b, 0, j))

    itemsize = jnp.dtype(x.dtype).itemsize
    param_bytes = 4 * (w1.size + b1.size + w2.size + b2.size + ws.size + bs.size)
    cost = pl.CostEstimate(
        flops=2 * B * N * (C_in * hidden + hidden * C_out + C_in * C_out),
        transcendentals=0,
        bytes_accessed=B * N * (C_in + C_out) * itemsize + param_bytes,
    )

    out = pl.pallas_call(
        _mlp_res_kernel,
        out_shape=jax.ShapeDtypeStruct((B, C_out, Np), x.dtype),
        grid_spec=pltpu.PrefetchScalarGridSpec(
            num_scalar_prefetch=0,
            grid=(B, n_tiles),
            in_specs=in_specs,
            out_specs=out_specs,
        ),
        compiler_params=pltpu.CompilerParams(
            # Both grid axes are independent -> shard across v7x's 2 TensorCores.
            dimension_semantics=("parallel", "parallel"),
        ),
        cost_estimate=cost,
    )(x, w1, b1c, w2, b2c, ws, bsc)

    return out[:, :, :N]


def init_mlp_res_params(key, in_dim, hidden_dim, out_dim):
    """Deterministic init mimicking PyTorch Conv1d default (kaiming-uniform).

    Weights are stored in PyTorch layout (C_out, C_in) — used directly as W @ X.
    """
    def conv_init(key, c_in, c_out):
        kw, kb = jax.random.split(key)
        bound = 1.0 / math.sqrt(c_in)  # fan_in = c_in * kernel_size(=1)
        w = jax.random.uniform(kw, (c_out, c_in), jnp.float32, -bound, bound)
        b = jax.random.uniform(kb, (c_out,), jnp.float32, -bound, bound)
        return w, b

    k1, k2, k3 = jax.random.split(key, 3)
    w1, b1 = conv_init(k1, in_dim, hidden_dim)
    w2, b2 = conv_init(k2, hidden_dim, out_dim)
    ws, bs = conv_init(k3, in_dim, out_dim)
    return w1, b1, w2, b2, ws, bs


def mlp_res_reference(x, w1, b1, w2, b2, ws, bs):
    """Pure-JAX reference of the PyTorch MLP_Res forward."""
    def conv1x1(h, w, b):
        return jnp.einsum("oc,bcn->bon", w, h) + b[None, :, None]

    shortcut = conv1x1(x, ws, bs)
    h = jnp.maximum(conv1x1(x, w1, b1), 0.0)
    return conv1x1(h, w2, b2) + shortcut


if __name__ == "__main__":
    key = jax.random.PRNGKey(0)

    # Small shapes consistent with MLP_Res(in_dim, hidden_dim, out_dim) on (B, in_dim, N).
    B, in_dim, hidden_dim, out_dim, N = 2, 16, 32, 16, 64

    key, kx, kp = jax.random.split(key, 3)
    x = jax.random.normal(kx, (B, in_dim, N), jnp.float32)  # NCW like PyTorch
    w1, b1, w2, b2, ws, bs = init_mlp_res_params(kp, in_dim, hidden_dim, out_dim)

    out = mlp_res_forward(x, w1, b1, w2, b2, ws, bs, tn=512)
    out = jax.block_until_ready(out)

    ref = mlp_res_reference(x, w1, b1, w2, b2, ws, bs)
    assert out.shape == (B, out_dim, N), out.shape
    assert jnp.allclose(out, ref, atol=1e-5, rtol=1e-5), float(jnp.max(jnp.abs(out - ref)))

    print("KERNEL_OK")
</pallas_src>

<mosaic_0001>
module attributes {stable_mosaic.version = 11 : i64} {
  func.func @_mlp_res_kernel(%arg0: i32, %arg1: i32, %arg2: memref<1x16x128xf32, #tpu.memory_space<vmem>>, %arg3: memref<32x16xf32, #tpu.memory_space<vmem>>, %arg4: memref<32x1xf32, #tpu.memory_space<vmem>>, %arg5: memref<16x32xf32, #tpu.memory_space<vmem>>, %arg6: memref<16x1xf32, #tpu.memory_space<vmem>>, %arg7: memref<16x16xf32, #tpu.memory_space<vmem>>, %arg8: memref<16x1xf32, #tpu.memory_space<vmem>>, %arg9: memref<1x16x128xf32, #tpu.memory_space<vmem>>) attributes {dimension_semantics = [#tpu.dimension_semantics<parallel>, #tpu.dimension_semantics<parallel>], iteration_bounds = array<i64: 2, 1>, scalar_prefetch = 0 : i64, scratch_operands = 0 : i64, tpu.core_type = #tpu.core_type<tc>, window_params = [{transform_indices = @transform_0, window_bounds = array<i64: 1, 16, 128>}, {pipeline_mode = #tpu.pipeline_mode<synchronous>, transform_indices = @transform_1, window_bounds = array<i64: 32, 16>}, {pipeline_mode = #tpu.pipeline_mode<synchronous>, transform_indices = @transform_2, window_bounds = array<i64: 32, 1>}, {pipeline_mode = #tpu.pipeline_mode<synchronous>, transform_indices = @transform_3, window_bounds = array<i64: 16, 32>}, {pipeline_mode = #tpu.pipeline_mode<synchronous>, transform_indices = @transform_4, window_bounds = array<i64: 16, 1>}, {pipeline_mode = #tpu.pipeline_mode<synchronous>, transform_indices = @transform_5, window_bounds = array<i64: 16, 16>}, {pipeline_mode = #tpu.pipeline_mode<synchronous>, transform_indices = @transform_6, window_bounds = array<i64: 16, 1>}, {transform_indices = @transform_7, window_bounds = array<i64: 1, 16, 128>}]} {
    %c0 = arith.constant 0 : index
    %c0_0 = arith.constant 0 : index
    %c0_1 = arith.constant 0 : index
    %0 = vector.load %arg2[%c0, %c0_0, %c0_1] : memref<1x16x128xf32, #tpu.memory_space<vmem>>, vector<1x16x128xf32>
    %1 = vector.shape_cast %0 : vector<1x16x128xf32> to vector<16x128xf32>
    %c0_2 = arith.constant 0 : index
    %c0_3 = arith.constant 0 : index
    %2 = vector.load %arg3[%c0_2, %c0_3] : memref<32x16xf32, #tpu.memory_space<vmem>>, vector<32x16xf32>
    %cst = arith.constant dense<0.000000e+00> : vector<32x128xf32>
    %3 = tpu.matmul %2, %1, %cst {dimension_numbers = #tpu.dot_dimension_numbers<[1], [0], [0], [1], [0, 0, 1, 1], [], []>} : vector<32x16xf32>, vector<16x128xf32>, vector<32x128xf32> -> vector<32x128xf32>
    %c0_4 = arith.constant 0 : index
    %c0_5 = arith.constant 0 : index
    %4 = vector.load %arg4[%c0_4, %c0_5] : memref<32x1xf32, #tpu.memory_space<vmem>>, vector<32x1xf32>
    %5 = vector.broadcast %4 : vector<32x1xf32> to vector<32x128xf32>
    %6 = arith.addf %3, %5 : vector<32x128xf32>
    %cst_6 = arith.constant 0.000000e+00 : f32
    %7 = vector.broadcast %cst_6 : f32 to vector<32x128xf32>
    %8 = arith.maximumf %6, %7 : vector<32x128xf32>
    %c0_7 = arith.constant 0 : index
    %c0_8 = arith.constant 0 : index
    %9 = vector.load %arg5[%c0_7, %c0_8] : memref<16x32xf32, #tpu.memory_space<vmem>>, vector<16x32xf32>
    %cst_9 = arith.constant dense<0.000000e+00> : vector<16x128xf32>
    %10 = tpu.matmul %9, %8, %cst_9 {dimension_numbers = #tpu.dot_dimension_numbers<[1], [0], [0], [1], [0, 0, 1, 1], [], []>} : vector<16x32xf32>, vector<32x128xf32>, vector<16x128xf32> -> vector<16x128xf32>
    %c0_10 = arith.constant 0 : index
    %c0_11 = arith.constant 0 : index
    %11 = vector.load %arg6[%c0_10, %c0_11] : memref<16x1xf32, #tpu.memory_space<vmem>>, vector<16x1xf32>
    %12 = vector.broadcast %11 : vector<16x1xf32> to vector<16x128xf32>
    %13 = arith.addf %10, %12 : vector<16x128xf32>
    %c0_12 = arith.constant 0 : index
    %c0_13 = arith.constant 0 : index
    %14 = vector.load %arg7[%c0_12, %c0_13] : memref<16x16xf32, #tpu.memory_space<vmem>>, vector<16x16xf32>
    %cst_14 = arith.constant dense<0.000000e+00> : vector<16x128xf32>
    %15 = tpu.matmul %14, %1, %cst_14 {dimension_numbers = #tpu.dot_dimension_numbers<[1], [0], [0], [1], [0, 0, 1, 1], [], []>} : vector<16x16xf32>, vector<16x128xf32>, vector<16x128xf32> -> vector<16x128xf32>
    %c0_15 = arith.constant 0 : index
    %c0_16 = arith.constant 0 : index
    %16 = vector.load %arg8[%c0_15, %c0_16] : memref<16x1xf32, #tpu.memory_space<vmem>>, vector<16x1xf32>
    %17 = vector.broadcast %16 : vector<16x1xf32> to vector<16x128xf32>
    %18 = arith.addf %15, %17 : vector<16x128xf32>
    %19 = arith.addf %13, %18 : vector<16x128xf32>
    %c0_17 = arith.constant 0 : index
    %c0_18 = arith.constant 0 : index
    %c0_19 = arith.constant 0 : index
    %20 = vector.load %arg9[%c0_17, %c0_18, %c0_19] : memref<1x16x128xf32, #tpu.memory_space<vmem>>, vector<1x16x128xf32>
    %21 = vector.shape_cast %20 : vector<1x16x128xf32> to vector<16x128xf32>
    %22 = vector.shape_cast %19 : vector<16x128xf32> to vector<1x16x128xf32>
    tpu.vector_store %arg9[%c0_17, %c0_18, %c0_19], %22 {strides = array<i32>} : memref<1x16x128xf32, #tpu.memory_space<vmem>>, vector<1x16x128xf32>,
    return
  }
  func.func @transform_0(%arg0: i32, %arg1: i32) -> (i32, i32, i32) {
    %c0_i32 = arith.constant 0 : i32
    %c0_i32_0 = arith.constant 0 : i32
    return %arg0, %c0_i32, %arg1 : i32, i32, i32
  }
  func.func @transform_1(%arg0: i32, %arg1: i32) -> (i32, i32) {
    %c0_i32 = arith.constant 0 : i32
    %c0_i32_0 = arith.constant 0 : i32
    %c0_i32_1 = arith.constant 0 : i32
    return %c0_i32, %c0_i32_0 : i32, i32
  }
  func.func @transform_2(%arg0: i32, %arg1: i32) -> (i32, i32) {
    %c0_i32 = arith.constant 0 : i32
    %c0_i32_0 = arith.constant 0 : i32
    %c0_i32_1 = arith.constant 0 : i32
    return %c0_i32, %c0_i32_0 : i32, i32
  }
  func.func @transform_3(%arg0: i32, %arg1: i32) -> (i32, i32) {
    %c0_i32 = arith.constant 0 : i32
    %c0_i32_0 = arith.constant 0 : i32
    %c0_i32_1 = arith.constant 0 : i32
    return %c0_i32, %c0_i32_0 : i32, i32
  }
  func.func @transform_4(%arg0: i32, %arg1: i32) -> (i32, i32) {
    %c0_i32 = arith.constant 0 : i32
    %c0_i32_0 = arith.constant 0 : i32
    %c0_i32_1 = arith.constant 0 : i32
    return %c0_i32, %c0_i32_0 : i32, i32
  }
  func.func @transform_5(%arg0: i32, %arg1: i32) -> (i32, i32) {
    %c0_i32 = arith.constant 0 : i32
    %c0_i32_0 = arith.constant 0 : i32
    %c0_i32_1 = arith.constant 0 : i32
    return %c0_i32, %c0_i32_0 : i32, i32
  }
  func.func @transform_6(%arg0: i32, %arg1: i32) -> (i32, i32) {
    %c0_i32 = arith.constant 0 : i32
    %c0_i32_0 = arith.constant 0 : i32
    %c0_i32_1 = arith.constant 0 : i32
    return %c0_i32, %c0_i32_0 : i32, i32
  }
  func.func @transform_7(%arg0: i32, %arg1: i32) -> (i32, i32, i32) {
    %c0_i32 = arith.constant 0 : i32
    %c0_i32_0 = arith.constant 0 : i32
    return %arg0, %c0_i32, %arg1 : i32, i32, i32
  }
}

</mosaic_0001>

<llo_original>
// kernel: tpu_custom_call.1
$region0: #{tpu_custom_call.1}
  #allocation0 [shape = 'u32[]', space=smem, size = 0x4, offset = 0x4, fixed_abs, tag = 'smem constant byte address 0x4 - core index']
  #allocation1 [shape = 'u32[72,128]{1,0:T(1,128)}', space=vmem, size = 0x9000, scoped, tag = 'internal scratch']
  %s0 = inlined_call_operand.vmem [shape: f32[2,16,128], index: 0, kind: input, shape index: {}]
  %s1 = inlined_call_operand.vmem [shape: f32[32,16], index: 1, kind: input, shape index: {}]
  %s2 = inlined_call_operand.vmem [shape: f32[32,1], index: 2, kind: input, shape index: {}]
  %s3 = inlined_call_operand.vmem [shape: f32[16,32], index: 3, kind: input, shape index: {}]
  %s4 = inlined_call_operand.vmem [shape: f32[16,1], index: 4, kind: input, shape index: {}]
  %s5 = inlined_call_operand.vmem [shape: f32[16,16], index: 5, kind: input, shape index: {}]
  %s6 = inlined_call_operand.vmem [shape: f32[16,1], index: 6, kind: input, shape index: {}]
  %s7 = inlined_call_operand.hbm [shape: f32[2,16,128], index: 7, kind: output, shape index: {}]
  %s8 = sld [smem:[#allocation0]]
  $region61: #{tpu_custom_call.1} parent=0
    _
  %s10 = ssub.s32 1, %s8
  %s11 = scalar_select 0, %s10, %s8
  $region1: #{tpu_custom_call.1} parent=0
    #allocation2 [shape = 'u8[16384]{0}', space=vmem, size = 0x4000, scoped, tag = 'output window, operand 0']
    #allocation3 [shape = 's32[2]{0}', space=sflag, size = 0x8, scoped, tag = 'scoped memory for tpu_custom_call.1']
    %12 = vsyncpa [#allocation3], 0
    %s13 = scalar_lea.sflag [#allocation3], 1
    %14 = vsyncpa %s13, 0
    loop: start=0, step=1, limit=4
    $region2: #{tpu_custom_call.1} parent=1 // loop_pre_header
      _
    $region3: #{tpu_custom_call.1} parent=1 // loop_header
      %s16 = sphi 0, %s20
      %p17 = scmp.ge.s32.totalorder %s16, 4
      %s23 = sphi 0, %s35
      %s24 = sphi 0, %s31
      %s25 = sphi 0, %s23
      %s26 = sphi 0, %s24
      %s27 = sphi 0, %s25
      %s28 = sphi 0, %s26
      %s40 = sphi 0, %s42
      %s43 = sphi 0, %s40
      %s44 = sphi 0, %s43
      %s60 = sphi 0, %s44
      %s64 = sphi 0, %s64
      %s66 = sphi 0, %s64
      %s67 = sphi 0, %s66
      %s81 = sphi 0, %s67
      %s85 = sphi 0, %s85
      %s87 = sphi 0, %s85
      %s88 = sphi 0, %s87
      %s102 = sphi 0, %s88
      %s106 = sphi 0, %s106
      %s108 = sphi 0, %s106
      %s109 = sphi 0, %s108
      %s123 = sphi 0, %s109
      %s127 = sphi 0, %s127
      %s129 = sphi 0, %s127
      %s130 = sphi 0, %s129
      %s144 = sphi 0, %s130
      %s148 = sphi 0, %s148
      %s150 = sphi 0, %s148
      %s151 = sphi 0, %s150
      %s165 = sphi 0, %s151
      %s169 = sphi 0, %s169
      %s171 = sphi 0, %s169
      %s172 = sphi 0, %s171
      %s186 = sphi 0, %s172
      %s194 = sphi 0, %s196
      %s197 = sphi 0, %s194
      %s198 = sphi 0, %s197
      %s214 = sphi 0, %s198
    $region4: #{tpu_custom_call.1} parent=1 // loop_header_branch
      %19 = sbr.rel (%p17) target = $region8
    $region5: #{tpu_custom_call.1} parent=1 // loop_body
      %s21 = ssub.s32 %s16, 1
      %s22 = ssub.s32 %s16, 2
      %s29 = sadd.s32 1, %s24
      %p30 = scmp.ge.s32.totalorder %s29, 1
      %s31 = scalar_select %p30, 0, %s29
      %s32 = sadd.s32 1, %s23
      %s33 = scalar_select %p30, %s32, %s23
      %p34 = scmp.ge.s32.totalorder %s33, 2
      %s35 = scalar_select %p34, 0, %s33
      %s36 = ssub.s32 %s23, %s35
      %s37 = ssub.s32 %s24, %s31
      %s38 = sor.u32 %s36, %s37
      %p39 = scmp.eq.s32.totalorder %s38, 0
      %s41 = sadd.s32 %s40, 1
      %s42 = scalar_select %p39, %s40, %s41
      %p45 = pneg %p39
      %p46 = scmp.eq.s32.totalorder %s16, 1
      %p47 = por %p45, %p46
      %p48 = scmp.ne.s32.totalorder %s40, %s43
      %p49 = scmp.eq.s32.totalorder %s16, 0
      %p50 = por %p48, %p49
      %p51 = scmp.ne.s32.totalorder %s40, %s43
      %p52 = scmp.eq.s32.totalorder %s21, 1
      %p53 = por %p51, %p52
      %p54 = scmp.ne.s32.totalorder %s43, %s44
      %p55 = scmp.eq.s32.totalorder %s21, 0
      %p56 = por %p54, %p55
      %p57 = scmp.ne.s32.totalorder %s43, %s44
      %p58 = scmp.eq.s32.totalorder %s22, 1
      %p59 = por %p57, %p58
      %p61 = scmp.ne.s32.totalorder %s44, %s60
      %p62 = scmp.eq.s32.totalorder %s22, 0
      %p63 = por %p61, %p62
      %s65 = sadd.s32 %s64, 1
      %p68 = scmp.eq.s32.totalorder %s16, 1
      %p69 = scmp.ne.s32.totalorder %s64, %s66
      %p70 = scmp.eq.s32.totalorder %s16, 0
      %p71 = por %p69, %p70
      %p72 = scmp.ne.s32.totalorder %s64, %s66
      %p73 = scmp.eq.s32.totalorder %s21, 1
      %p74 = por %p72, %p73
      %p75 = scmp.ne.s32.totalorder %s66, %s67
      %p76 = scmp.eq.s32.totalorder %s21, 0
      %p77 = por %p75, %p76
      %p78 = scmp.ne.s32.totalorder %s66, %s67
      %p79 = scmp.eq.s32.totalorder %s22, 1
      %p80 = por %p78, %p79
      %p82 = scmp.ne.s32.totalorder %s67, %s81
      %p83 = scmp.eq.s32.totalorder %s22, 0
      %p84 = por %p82, %p83
      %s86 = sadd.s32 %s85, 1
      %p89 = scmp.eq.s32.totalorder %s16, 1
      %p90 = scmp.ne.s32.totalorder %s85, %s87
      %p91 = scmp.eq.s32.totalorder %s16, 0
      %p92 = por %p90, %p91
      %p93 = scmp.ne.s32.totalorder %s85, %s87
      %p94 = scmp.eq.s32.totalorder %s21, 1
      %p95 = por %p93, %p94
      %p96 = scmp.ne.s32.totalorder %s87, %s88
      %p97 = scmp.eq.s32.totalorder %s21, 0
      %p98 = por %p96, %p97
      %p99 = scmp.ne.s32.totalorder %s87, %s88
      %p100 = scmp.eq.s32.totalorder %s22, 1
      %p101 = por %p99, %p100
      %p103 = scmp.ne.s32.totalorder %s88, %s102
      %p104 = scmp.eq.s32.totalorder %s22, 0
      %p105 = por %p103, %p104
      %s107 = sadd.s32 %s106, 1
      %p110 = scmp.eq.s32.totalorder %s16, 1
      %p111 = scmp.ne.s32.totalorder %s106, %s108
      %p112 = scmp.eq.s32.totalorder %s16, 0
      %p113 = por %p111, %p112
      %p114 = scmp.ne.s32.totalorder %s106, %s108
      %p115 = scmp.eq.s32.totalorder %s21, 1
      %p116 = por %p114, %p115
      %p117 = scmp.ne.s32.totalorder %s108, %s109
      %p118 = scmp.eq.s32.totalorder %s21, 0
      %p119 = por %p117, %p118
      %p120 = scmp.ne.s32.totalorder %s108, %s109
      %p121 = scmp.eq.s32.totalorder %s22, 1
      %p122 = por %p120, %p121
      %p124 = scmp.ne.s32.totalorder %s109, %s123
      %p125 = scmp.eq.s32.totalorder %s22, 0
      %p126 = por %p124, %p125
      %s128 = sadd.s32 %s127, 1
      %p131 = scmp.eq.s32.totalorder %s16, 1
      %p132 = scmp.ne.s32.totalorder %s127, %s129
      %p133 = scmp.eq.s32.totalorder %s16, 0
      %p134 = por %p132, %p133
      %p135 = scmp.ne.s32.totalorder %s127, %s129
      %p136 = scmp.eq.s32.totalorder %s21, 1
      %p137 = por %p135, %p136
      %p138 = scmp.ne.s32.totalorder %s129, %s130
      %p139 = scmp.eq.s32.totalorder %s21, 0
      %p140 = por %p138, %p139
      %p141 = scmp.ne.s32.totalorder %s129, %s130
      %p142 = scmp.eq.s32.totalorder %s22, 1
      %p143 = por %p141, %p142
      %p145 = scmp.ne.s32.totalorder %s130, %s144
      %p146 = scmp.eq.s32.totalorder %s22, 0
      %p147 = por %p145, %p146
      %s149 = sadd.s32 %s148, 1
      %p152 = scmp.eq.s32.totalorder %s16, 1
      %p153 = scmp.ne.s32.totalorder %s148, %s150
      %p154 = scmp.eq.s32.totalorder %s16, 0
      %p155 = por %p153, %p154
      %p156 = scmp.ne.s32.totalorder %s148, %s150
      %p157 = scmp.eq.s32.totalorder %s21, 1
      %p158 = por %p156, %p157
      %p159 = scmp.ne.s32.totalorder %s150, %s151
      %p160 = scmp.eq.s32.totalorder %s21, 0
      %p161 = por %p159, %p160
      %p162 = scmp.ne.s32.totalorder %s150, %s151
      %p163 = scmp.eq.s32.totalorder %s22, 1
      %p164 = por %p162, %p163
      %p166 = scmp.ne.s32.totalorder %s151, %s165
      %p167 = scmp.eq.s32.totalorder %s22, 0
      %p168 = por %p166, %p167
      %s170 = sadd.s32 %s169, 1
      %p173 = scmp.eq.s32.totalorder %s16, 1
      %p174 = scmp.ne.s32.totalorder %s169, %s171
      %p175 = scmp.eq.s32.totalorder %s16, 0
      %p176 = por %p174, %p175
      %p177 = scmp.ne.s32.totalorder %s169, %s171
      %p178 = scmp.eq.s32.totalorder %s21, 1
      %p179 = por %p177, %p178
      %p180 = scmp.ne.s32.totalorder %s171, %s172
      %p181 = scmp.eq.s32.totalorder %s21, 0
      %p182 = por %p180, %p181
      %p183 = scmp.ne.s32.totalorder %s171, %s172
      %p184 = scmp.eq.s32.totalorder %s22, 1
      %p185 = por %p183, %p184
      %p187 = scmp.ne.s32.totalorder %s172, %s186
      %p188 = scmp.eq.s32.totalorder %s22, 0
      %p189 = por %p187, %p188
      %s190 = ssub.s32 %s23, %s35
      %s191 = ssub.s32 %s24, %s31
      %s192 = sor.u32 %s190, %s191
      %p193 = scmp.eq.s32.totalorder %s192, 0
      %s195 = sadd.s32 %s194, 1
      %s196 = scalar_select %p193, %s194, %s195
      %p199 = pneg %p193
      %p200 = scmp.eq.s32.totalorder %s16, 1
      %p201 = por %p199, %p200
      %p202 = scmp.ne.s32.totalorder %s194, %s197
      %p203 = scmp.eq.s32.totalorder %s16, 0
      %p204 = por %p202, %p203
      %p205 = scmp.ne.s32.totalorder %s194, %s197
      %p206 = scmp.eq.s32.totalorder %s21, 1
      %p207 = por %p205, %p206
      %p208 = scmp.ne.s32.totalorder %s197, %s198
      %p209 = scmp.eq.s32.totalorder %s21, 0
      %p210 = por %p208, %p209
      %p211 = scmp.ne.s32.totalorder %s197, %s198
      %p212 = scmp.eq.s32.totalorder %s22, 1
      %p213 = por %p211, %p212
      %p215 = scmp.ne.s32.totalorder %s198, %s214
      %p216 = scmp.eq.s32.totalorder %s22, 0
      %p217 = por %p215, %p216
      %p218 = scmp.le.s32.totalorder 1, %s16
      %p219 = scmp.lt.s32.totalorder %s16, 3
      %p220 = pnand %p218, %p219
      %p221 = pneg %p220
      // Predicated region
      $region9: #{tpu_custom_call.1} parent=5 // pred_check
        _
      $region10: #{tpu_custom_call.1} parent=5 // pred_check_branch
        %223 = sbr.rel (%p220) target = $region12
      $region11: #{tpu_custom_call.1} parent=5 // pred_region
        %s224 = ssub.s32 %s16, 1
        // Predicated region
        $region13: #{tpu_custom_call.1} parent=11 // pred_check
          %p225 = pneg %p77
        $region14: #{tpu_custom_call.1} parent=11 // pred_check_branch
          %227 = sbr.rel (%p225) target = $region16
        $region15: #{tpu_custom_call.1} parent=11 // pred_region
          _
        $region16: #{tpu_custom_call.1} parent=11 // pred_fallthru
          _
        // Predicated region
        $region17: #{tpu_custom_call.1} parent=11 // pred_check
          %p228 = pneg %p98
        $region18: #{tpu_custom_call.1} parent=11 // pred_check_branch
          %230 = sbr.rel (%p228) target = $region20
        $region19: #{tpu_custom_call.1} parent=11 // pred_region
          _
        $region20: #{tpu_custom_call.1} parent=11 // pred_fallthru
          _
        // Predicated region
        $region21: #{tpu_custom_call.1} parent=11 // pred_check
          %p231 = pneg %p119
        $region22: #{tpu_custom_call.1} parent=11 // pred_check_branch
          %233 = sbr.rel (%p231) target = $region24
        $region23: #{tpu_custom_call.1} parent=11 // pred_region
          _
        $region24: #{tpu_custom_call.1} parent=11 // pred_fallthru
          _
        // Predicated region
        $region25: #{tpu_custom_call.1} parent=11 // pred_check
          %p234 = pneg %p140
        $region26: #{tpu_custom_call.1} parent=11 // pred_check_branch
          %236 = sbr.rel (%p234) target = $region28
        $region27: #{tpu_custom_call.1} parent=11 // pred_region
          _
        $region28: #{tpu_custom_call.1} parent=11 // pred_fallthru
          _
        // Predicated region
        $region29: #{tpu_custom_call.1} parent=11 // pred_check
          %p237 = pneg %p161
        $region30: #{tpu_custom_call.1} parent=11 // pred_check_branch
          %239 = sbr.rel (%p237) target = $region32
        $region31: #{tpu_custom_call.1} parent=11 // pred_region
          _
        $region32: #{tpu_custom_call.1} parent=11 // pred_fallthru
          _
        // Predicated region
        $region33: #{tpu_custom_call.1} parent=11 // pred_check
          %p240 = pneg %p182
        $region34: #{tpu_custom_call.1} parent=11 // pred_check_branch
          %242 = sbr.rel (%p240) target = $region36
        $region35: #{tpu_custom_call.1} parent=11 // pred_region
          _
        $region36: #{tpu_custom_call.1} parent=11 // pred_fallthru
          _
      $region12: #{tpu_custom_call.1} parent=5 // pred_fallthru
        _
      %p243 = scmp.lt.s32.totalorder %s16, 2
      // Predicated region
      $region37: #{tpu_custom_call.1} parent=5 // pred_check
        %p244 = pneg %p243
      $region38: #{tpu_custom_call.1} parent=5 // pred_check_branch
        %246 = sbr.rel (%p244) target = $region40
      $region39: #{tpu_custom_call.1} parent=5 // pred_region
        // Predicated region
        $region41: #{tpu_custom_call.1} parent=39 // pred_check
          %p247 = pneg %p50
        $region42: #{tpu_custom_call.1} parent=39 // pred_check_branch
          %249 = sbr.rel (%p247) target = $region44
        $region43: #{tpu_custom_call.1} parent=39 // pred_region
          %p250 = scmp.lt.s32.totalorder %s23, 1
          %s251 = scalar_select %p250, %s23, 1
          %p252 = scmp.lt.s32.totalorder %s24, 0
          %s253 = scalar_select %p252, %s24, 0
          %s254 = smul.addr %s251, 2
          %s255 = sadd.s32 %s253, %s254
          %s256 = smul.addr %s255, 8
          %s257 = scalar_lea.vmem %s0, %s256
        $region44: #{tpu_custom_call.1} parent=39 // pred_fallthru
          _
      $region40: #{tpu_custom_call.1} parent=5 // pred_fallthru
        _
      %p258 = scmp.le.s32.totalorder 1, %s16
      %p259 = scmp.lt.s32.totalorder %s16, 3
      %p260 = pnand %p258, %p259
      %p261 = pneg %p260
      // Predicated region
      $region45: #{tpu_custom_call.1} parent=5 // pred_check
        _
      $region46: #{tpu_custom_call.1} parent=5 // pred_check_branch
        %263 = sbr.rel (%p260) target = $region48
      $region47: #{tpu_custom_call.1} parent=5 // pred_region
        %s264 = ssub.s32 %s16, 1
        %p265 = scmp.lt.s32.totalorder %s25, 1
        %s266 = scalar_select %p265, %s25, 1
        %p267 = scmp.lt.s32.totalorder %s26, 0
        %s268 = scalar_select %p267, %s26, 0
        %s269 = smul.addr %s266, 2
        %s270 = sadd.s32 %s268, %s269
        %s271 = smul.addr %s270, 8
        %s272 = scalar_lea.vmem %s0, %s271
        %p273 = pneg %p56
        %p274 = pneg %p53
        %p275 = pneg %p77
        %p276 = pneg %p74
        %p277 = pneg %p98
        %p278 = pneg %p95
        %p279 = pneg %p119
        %p280 = pneg %p116
        %p281 = pneg %p140
        %p282 = pneg %p137
        %p283 = pneg %p161
        %p284 = pneg %p158
        %p285 = pneg %p182
        %p286 = pneg %p179
        %p287 = pneg %p210
        %p288 = pneg %p207
        %s289 = sand.u32 %s197, 1
        %s290 = scalar_lea.sflag [#allocation3], %s289
        %s291 = sand.u32 %s197, 1
        %s292 = smul.addr %s291, 16
        %s293 = scalar_lea.vmem [#allocation2], %s292
        %p294 = scmp.lt.s32.totalorder %s25, 1
        %s295 = scalar_select %p294, %s25, 1
        %p296 = scmp.lt.s32.totalorder %s26, 0
        %s297 = scalar_select %p296, %s26, 0
        %s298 = smul.addr %s295, 2
        %s299 = sadd.s32 %s297, %s298
        %s300 = smul.addr %s299, 8
        %s301 = scalar_lea.vmem %s0, %s300
        %v302 = vld [vmem:[%s301] sm:$0xff]
        %v303 = vld [vmem:[%s301 + $0x8] sm:$0xff]
        %v304 = vld [vmem:[%s1] sm:$0xff]
        %v305 = vld [vmem:[%s1 + $0x8] sm:$0xff]
        %v306 = vld [vmem:[%s1 + $0x10] sm:$0xff]
        %v307 = vld [vmem:[%s1 + $0x18] sm:$0xff]
        %v308 = vld [vmem:[%s2] sm:$0xff]
        %v309 = vld [vmem:[%s2 + $0x8] sm:$0xff]
        %v310 = vld [vmem:[%s2 + $0x10] sm:$0xff]
        %v311 = vld [vmem:[%s2 + $0x18] sm:$0xff]
        %313 = vset.pattern.permute.xlu0 0
        %314 = vperm.xlu0 %313, %v308
        %v315 = vpop.permute.xlu0 %314
        %318 = vset.pattern.permute.xlu0 0
        %319 = vperm.xlu0 %318, %v309
        %v320 = vpop.permute.xlu0 %319
        %323 = vset.pattern.permute.xlu0 0
        %324 = vperm.xlu0 %323, %v310
        %v325 = vpop.permute.xlu0 %324
        %328 = vset.pattern.permute.xlu0 0
        %329 = vperm.xlu0 %328, %v311
        %v330 = vpop.permute.xlu0 %329
        %vm332 = vcmask 130048
        %v334 = vsel %vm332, %v304, 0
        %v337 = vsel %vm332, %v305, 0
        %v340 = vsel %vm332, %v306, 0
        %v343 = vsel %vm332, %v307, 0
        %345 = vmatpush.msra.mxu0 0.0
        %346 = vmatpush.msra.mxu0 0.0
        %347 = vmatpush.msra.mxu0 0.0
        %348 = vmatpush.msra.mxu0 0.0
        %349 = vmatpush.msra.mxu0 0.0
        %350 = vmatpush.msra.mxu0 0.0
        %351 = vmatpush.msra.mxu0 0.0
        %352 = vmatpush.msra.mxu0 0.0
        %353 = vmatpush.msra.mxu0 0.0
        %354 = vmatpush.msra.mxu0 0.0
        %355 = vmatpush.msra.mxu0 0.0
        %356 = vmatpush.msra.mxu0 0.0
        %357 = vmatpush.msra.mxu0 0.0
        %358 = vmatpush.msra.mxu0 0.0
        %359 = vmatpush.msra.mxu0 %v303
        %360 = vmatpush.msra.mxu0 %v302
        %361 = vmatmul.f32.gmra.mxu0 %v334
        %v362 = vpop.f32.mrf.mxu0
        %v363 = vadd.f32 %v315, %v362
        %364 = vmatmul.f32.gmra.mxu0 %v337
        %v365 = vpop.f32.mrf.mxu0
        %v366 = vadd.f32 %v320, %v365
        %367 = vmatmul.f32.gmra.mxu0 %v340
        %v368 = vpop.f32.mrf.mxu0
        %v369 = vadd.f32 %v325, %v368
        %370 = vmatmul.f32.gmra.mxu0 %v343
        %v371 = vpop.f32.mrf.mxu0
        %v372 = vadd.f32 %v330, %v371
        %373 = vdwg.mxu0
        %v374 = vmax.f32 %v363, 0.0
        %v375 = vmax.f32 %v366, 0.0
        %v376 = vmax.f32 %v369, 0.0
        %v377 = vmax.f32 %v372, 0.0
        %v378 = vld [vmem:[%s3] sm:$0xff]
        %v379 = vld [vmem:[%s3 + $0x8] sm:$0xff]
        %v380 = vld [vmem:[%s4] sm:$0xff]
        %v381 = vld [vmem:[%s4 + $0x8] sm:$0xff]
        %383 = vset.pattern.permute.xlu0 0
        %384 = vperm.xlu0 %383, %v380
        %v385 = vpop.permute.xlu0 %384
        %388 = vset.pattern.permute.xlu0 0
        %389 = vperm.xlu0 %388, %v381
        %v390 = vpop.permute.xlu0 %389
        %vm392 = vcmask 261120
        %v394 = vsel %vm392, %v378, 0
        %v397 = vsel %vm392, %v379, 0
        %399 = vmatpush.msra.mxu0 0.0
        %400 = vmatpush.msra.mxu0 0.0
        %401 = vmatpush.msra.mxu0 0.0
        %402 = vmatpush.msra.mxu0 0.0
        %403 = vmatpush.msra.mxu0 0.0
        %404 = vmatpush.msra.mxu0 0.0
        %405 = vmatpush.msra.mxu0 0.0
        %406 = vmatpush.msra.mxu0 0.0
        %407 = vmatpush.msra.mxu0 0.0
        %408 = vmatpush.msra.mxu0 0.0
        %409 = vmatpush.msra.mxu0 0.0
        %410 = vmatpush.msra.mxu0 0.0
        %411 = vmatpush.msra.mxu0 %v377
        %412 = vmatpush.msra.mxu0 %v376
        %413 = vmatpush.msra.mxu0 %v375
        %414 = vmatpush.msra.mxu0 %v374
        %415 = vmatmul.f32.gmra.mxu0 %v394
        %v416 = vpop.f32.mrf.mxu0
        %v417 = vadd.f32 %v385, %v416
        %418 = vmatmul.f32.gmra.mxu0 %v397
        %v419 = vpop.f32.mrf.mxu0
        %v420 = vadd.f32 %v390, %v419
        %421 = vdwg.mxu0
        %v422 = vld [vmem:[%s5] sm:$0xff]
        %v423 = vld [vmem:[%s5 + $0x8] sm:$0xff]
        %v424 = vld [vmem:[%s6] sm:$0xff]
        %v425 = vld [vmem:[%s6 + $0x8] sm:$0xff]
        %427 = vset.pattern.permute.xlu0 0
        %428 = vperm.xlu0 %427, %v424
        %v429 = vpop.permute.xlu0 %428
        %432 = vset.pattern.permute.xlu0 0
        %433 = vperm.xlu0 %432, %v425
        %v434 = vpop.permute.xlu0 %433
        %v437 = vsel %vm332, %v422, 0
        %v440 = vsel %vm332, %v423, 0
        %442 = vmatpush.msra.mxu0 0.0
        %443 = vmatpush.msra.mxu0 0.0
        %444 = vmatpush.msra.mxu0 0.0
        %445 = vmatpush.msra.mxu0 0.0
        %446 = vmatpush.msra.mxu0 0.0
        %447 = vmatpush.msra.mxu0 0.0
        %448 = vmatpush.msra.mxu0 0.0
        %449 = vmatpush.msra.mxu0 0.0
        %450 = vmatpush.msra.mxu0 0.0
        %451 = vmatpush.msra.mxu0 0.0
        %452 = vmatpush.msra.mxu0 0.0
        %453 = vmatpush.msra.mxu0 0.0
        %454 = vmatpush.msra.mxu0 0.0
        %455 = vmatpush.msra.mxu0 0.0
        %456 = vmatpush.msra.mxu0 %v303
        %457 = vmatpush.msra.mxu0 %v302
        %458 = vmatmul.f32.gmra.mxu0 %v437
        %v459 = vpop.f32.mrf.mxu0
        %v460 = vadd.f32 %v429, %v459
        %461 = vmatmul.f32.gmra.mxu0 %v440
        %v462 = vpop.f32.mrf.mxu0
        %v463 = vadd.f32 %v434, %v462
        %464 = vdwg.mxu0
        %v465 = vadd.f32 %v417, %v460
        %v466 = vadd.f32 %v420, %v463
        %467 = vst [vmem:[%s293] sm:$0xff] %v465
        %468 = vst [vmem:[%s293 + $0x8] sm:$0xff] %v466
        %s469 = sand.u32 %s197, 1
        %s470 = scalar_lea.sflag [#allocation3], %s469
        %s471 = sand.u32 %s197, 1
        %s472 = smul.addr %s471, 16
        %s473 = scalar_lea.vmem [#allocation2], %s472
        // Predicated region
        $region49: #{tpu_custom_call.1} parent=47 // pred_check
          %p474 = pneg %p207
        $region50: #{tpu_custom_call.1} parent=47 // pred_check_branch
          %476 = sbr.rel (%p474) target = $region52
        $region51: #{tpu_custom_call.1} parent=47 // pred_region
          %478 = vsyncadd %s470, 0
          %s479 = smul.addr %s25, 2
          %s480 = sadd.s32 %s26, %s479
          %s481 = smul.addr %s480, 8
          %s482 = scalar_lea.hbm %s7, %s481
          %s483 = sshll.u32 %s473, 4
          %s484 = int_to_ptr.vmem [resolvable:$true] %s483
          %s485 = sshll.u32 %s482, 4
          %s486 = int_to_ptr.hbm [resolvable:$true] %s485
          %491 = dma.vmem_to_hbm [thread:$0]  %s484, 256, %s486, %s470, 128, 128, 8
        $region52: #{tpu_custom_call.1} parent=47 // pred_fallthru
          _
      $region48: #{tpu_custom_call.1} parent=5 // pred_fallthru
        _
      %p492 = scmp.le.s32.totalorder 2, %s16
      // Predicated region
      $region53: #{tpu_custom_call.1} parent=5 // pred_check
        %p493 = pneg %p492
      $region54: #{tpu_custom_call.1} parent=5 // pred_check_branch
        %495 = sbr.rel (%p493) target = $region56
      $region55: #{tpu_custom_call.1} parent=5 // pred_region
        %s496 = ssub.s32 %s16, 2
        // Predicated region
        $region57: #{tpu_custom_call.1} parent=55 // pred_check
          %p497 = pneg %p213
        $region58: #{tpu_custom_call.1} parent=55 // pred_check_branch
          %499 = sbr.rel (%p497) target = $region60
        $region59: #{tpu_custom_call.1} parent=55 // pred_region
          %s500 = sand.u32 %s198, 1
          %s501 = scalar_lea.sflag [#allocation3], %s500
          %s502 = sand.u32 %s198, 1
          %s503 = smul.addr %s502, 16
          %s504 = scalar_lea.vmem [#allocation2], %s503
          %506 = dma.done %s501, 256
        $region60: #{tpu_custom_call.1} parent=55 // pred_fallthru
          _
      $region56: #{tpu_custom_call.1} parent=5 // pred_fallthru
        _
    $region6: #{tpu_custom_call.1} parent=1 // loop_footer
      %s20 = sadd.s32 1, %s16
    $region7: #{tpu_custom_call.1} parent=1 // loop_footer_branch
      %15 = sbr.rel target = $region3
    $region8: #{tpu_custom_call.1} parent=1 // loop_exit
      _
    %507 = vsyncpa [#allocation3], 1
    %s508 = scalar_lea.sflag [#allocation3], 1
    %509 = vsyncpa %s508, 1

</llo_original>
